<compile_context>
chip_gen: v6e
topology: v6e:2x2x1
jax: 0.10.0
libtpu: 0.0.40
codegen_flags: <defaults>
</compile_context>

<pallas_src>
import functools

import jax
import jax.numpy as jnp
from jax.experimental import pallas as pl
from jax.experimental.pallas import tpu as pltpu


def _sublane_base(dtype):
    """Native sublane packing for the dtype: 8 (32-bit), 16 (16-bit), 32 (8-bit)."""
    itemsize = jnp.dtype(dtype).itemsize
    if itemsize >= 4:
        return 8
    if itemsize == 2:
        return 16
    return 32


def _pick_tile(extent, base, cap):
    """Largest multiple of `base` that divides `extent` and is <= cap (>= base).
    Returns the full extent when `extent` is not a multiple of `base` (a
    full-dim block is always legal)."""
    if extent % base != 0:
        # TODO(synk): pad / ragged-block handling for extents not divisible by
        # the native tile; a full-extent fallback block can exceed the VMEM
        # budget for very large non-aligned shapes.
        return extent
    best = base
    t = base
    limit = min(cap, extent)
    while t <= limit:
        if extent % t == 0:
            best = t
        t += base
    return best


def _vmem_footprint_cap():
    """Per-kernel VMEM footprint budget (bytes), generation-aware.
    Bounds 2x(input block) + 2x(output block) + scratch."""
    try:
        vmem = pltpu.get_tpu_info().vmem_capacity_bytes
    except Exception:
        vmem = 128 << 20  # conservative fallback (v5e/v6e physical VMEM)
    # 128 MiB parts (v5e/v6e) -> 24 MiB; 64 MiB parts (v7x) -> 16 MiB.
    return max(8 << 20, min(vmem // 4, 24 << 20))


def _mean_dim1_kernel(x_ref, o_ref, acc_ref, *, inv_c, acc_rows):
    # x_ref:   (tile_c, tile_hw) slice of one batch element (batch dim squeezed)
    # o_ref:   (1, tile_hw) output slice, resident across the C grid axis
    # acc_ref: (acc_rows, tile_hw) f32 sublane-dense accumulator scratch
    k = pl.program_id(2)

    @pl.when(k == 0)
    def _():
        acc_ref[...] = jnp.zeros_like(acc_ref)

    tile_c, tile_hw = x_ref.shape
    groups = tile_c // acc_rows
    rem = tile_c - groups * acc_rows

    if groups > 0:
        # Vreg-group partial sums: pure VPU adds, all sublanes busy; no
        # cross-sublane traffic in the steady state.
        main = x_ref[: groups * acc_rows, :].reshape(groups, acc_rows, tile_hw)
        acc_ref[...] += jnp.sum(main, axis=0, dtype=jnp.float32)
    if rem > 0:
        # Fallback path when tile_c is not a multiple of the sublane pack.
        acc_ref[:rem, :] += x_ref[groups * acc_rows:, :].astype(jnp.float32)

    @pl.when(k == pl.num_programs(2) - 1)
    def _():
        # Single cross-sublane (XLU) collapse per output tile, then 1/C scale.
        total = jnp.sum(acc_ref[...], axis=0, keepdims=True)
        o_ref[...] = (total * inv_c).astype(o_ref.dtype)


def mean_proxy(x, *, block_byte_budget=None):
    """Mean over dim=1 (channels), keepdim=False. x: (N, C, H, W) -> (N, H, W)."""
    if not jnp.issubdtype(x.dtype, jnp.floating):
        raise TypeError(
            f"mean_proxy expects a floating dtype, got {x.dtype} "
            "(torch.mean rejects integer inputs)."
        )

    n, c, h, w = x.shape
    hw = h * w
    itemsize = jnp.dtype(x.dtype).itemsize
    acc_rows = _sublane_base(x.dtype)

    if block_byte_budget is None:
        block_byte_budget = _vmem_footprint_cap()

    # Fixed VMEM cost per H*W column: double-buffered output row + f32 scratch.
    per_col_fixed = 2 * itemsize + 4 * acc_rows

    # --- tile_hw: prefer the full spatial extent (fully contiguous DMA runs);
    # only tile H*W when even one minimal C-group at full H*W blows the budget.
    min_tile_c = c if c % acc_rows != 0 else acc_rows
    if hw % 128 == 0:
        hw_cap = block_byte_budget // (2 * min_tile_c * itemsize + per_col_fixed)
        tile_hw = _pick_tile(hw, 128, max(hw_cap, 128))
    else:
        tile_hw = hw  # full-extent fallback for non-128-multiple spatial sizes

    # Guarantee >= 2 parallel grid steps so v7x's second TensorCore has work
    # when N == 1 (no cost on single-TC v5e/v6e).
    if n == 1 and tile_hw == hw and hw % 256 == 0:
        tile_hw = _pick_tile(hw, 128, hw // 2)

    # --- tile_c: as many channel rows as the footprint budget allows
    # (dtype-aware sublane base so bf16/int8 land on unpadded native tiles).
    if c % acc_rows == 0:
        c_cap = (block_byte_budget // tile_hw - per_col_fixed) // (2 * itemsize)
        tile_c = _pick_tile(c, acc_rows, max(c_cap, acc_rows))
    else:
        tile_c = c  # full-extent fallback (see _pick_tile TODO)

    grid = (n, hw // tile_hw, c // tile_c)  # reduction (C) axis last

    # Explicit scoped-VMEM limit: 2x in + 2x out + scratch + headroom, clamped
    # to stay comfortably inside v7x's 64 MiB physical VMEM.
    footprint = (2 * tile_c * itemsize + per_col_fixed) * tile_hw
    vmem_limit = int(min(max(footprint + (4 << 20), 16 << 20), 48 << 20))

    # Lane-dense layout: last axis is H*W.
    x2 = x.reshape(n, c, hw)

    out3 = pl.pallas_call(
        functools.partial(_mean_dim1_kernel, inv_c=1.0 / c, acc_rows=acc_rows),
        out_shape=jax.ShapeDtypeStruct((n, 1, hw), x.dtype),
        grid_spec=pltpu.PrefetchScalarGridSpec(
            num_scalar_prefetch=0,
            grid=grid,
            in_specs=[
                pl.BlockSpec(
                    (pl.Squeezed(), tile_c, tile_hw),
                    lambda i, j, k: (i, k, j),
                )
            ],
            out_specs=pl.BlockSpec(
                (pl.Squeezed(), 1, tile_hw),
                lambda i, j, k: (i, 0, j),
            ),
            scratch_shapes=[pltpu.VMEM((acc_rows, tile_hw), jnp.float32)],
        ),
        compiler_params=pltpu.CompilerParams(
            # Batch and spatial tiles are independent (shardable across
            # TensorCores on v7x); the C axis carries the accumulator.
            dimension_semantics=("parallel", "parallel", "arbitrary"),
            vmem_limit_bytes=vmem_limit,
        ),
    )(x2)

    return out3.reshape(n, h, w)


if __name__ == "__main__":
    key = jax.random.PRNGKey(0)
    x = jax.random.normal(key, (2, 4, 16, 16), dtype=jnp.float32)

    out = mean_proxy(x)
    jax.block_until_ready(out)

    # Sanity check against plain JAX reference (same as torch.mean(x, dim=1)).
    ref = jnp.mean(x, axis=1)
    assert out.shape == (2, 16, 16), out.shape
    assert jnp.allclose(out, ref, atol=1e-5, rtol=1e-5), float(
        jnp.max(jnp.abs(out - ref))
    )

    print("KERNEL_OK")
</pallas_src>

<mosaic_0001>
module attributes {stable_mosaic.version = 11 : i64} {
  func.func @_mean_dim1_kernel(%arg0: i32, %arg1: i32, %arg2: i32, %arg3: memref<1x4x256xf32, #tpu.memory_space<vmem>>, %arg4: memref<1x1x256xf32, #tpu.memory_space<vmem>>, %arg5: memref<8x256xf32, #tpu.memory_space<vmem>>) attributes {dimension_semantics = [#tpu.dimension_semantics<parallel>, #tpu.dimension_semantics<parallel>, #tpu.dimension_semantics<arbitrary>], iteration_bounds = array<i64: 2, 1, 1>, scalar_prefetch = 0 : i64, scratch_operands = 1 : i64, tpu.core_type = #tpu.core_type<tc>, window_params = [{transform_indices = @transform_0, window_bounds = array<i64: 1, 4, 256>}, {transform_indices = @transform_1, window_bounds = array<i64: 1, 1, 256>}]} {
    %c0_i32 = arith.constant 0 : i32
    %0 = arith.cmpi eq, %arg2, %c0_i32 : i32
    %1 = arith.extui %0 : i1 to i32
    %c0_i32_0 = arith.constant 0 : i32
    %2 = arith.cmpi ne, %1, %c0_i32_0 : i32
    scf.if %2 {
      %cst = arith.constant 0.000000e+00 : f32
      %11 = vector.broadcast %cst : f32 to vector<8x256xf32>
      %c0_9 = arith.constant 0 : index
      %c0_10 = arith.constant 0 : index
      %12 = vector.load %arg5[%c0_9, %c0_10] : memref<8x256xf32, #tpu.memory_space<vmem>>, vector<8x256xf32>
      tpu.vector_store %arg5[%c0_9, %c0_10], %11 {strides = array<i32>} : memref<8x256xf32, #tpu.memory_space<vmem>>, vector<8x256xf32>,
    } else {
    }
    %c0 = arith.constant 0 : index
    %c0_1 = arith.constant 0 : index
    %3 = vector.load %arg5[%c0, %c0_1] : memref<8x256xf32, #tpu.memory_space<vmem>>, vector<4x256xf32>
    %c0_2 = arith.constant 0 : index
    %c0_3 = arith.constant 0 : index
    %c0_4 = arith.constant 0 : index
    %4 = vector.load %arg3[%c0_2, %c0_3, %c0_4] : memref<1x4x256xf32, #tpu.memory_space<vmem>>, vector<1x4x256xf32>
    %5 = vector.shape_cast %4 : vector<1x4x256xf32> to vector<4x256xf32>
    %6 = arith.addf %3, %5 : vector<4x256xf32>
    %c0_5 = arith.constant 0 : index
    %c0_6 = arith.constant 0 : index
    %7 = vector.load %arg5[%c0_5, %c0_6] : memref<8x256xf32, #tpu.memory_space<vmem>>, vector<4x256xf32>
    tpu.vector_store %arg5[%c0_5, %c0_6], %6 {strides = array<i32>} : memref<8x256xf32, #tpu.memory_space<vmem>>, vector<4x256xf32>,
    %c0_i32_7 = arith.constant 0 : i32
    %8 = arith.cmpi eq, %arg2, %c0_i32_7 : i32
    %9 = arith.extui %8 : i1 to i32
    %c0_i32_8 = arith.constant 0 : i32
    %10 = arith.cmpi ne, %9, %c0_i32_8 : i32
    scf.if %10 {
      %c0_9 = arith.constant 0 : index
      %c0_10 = arith.constant 0 : index
      %11 = vector.load %arg5[%c0_9, %c0_10] : memref<8x256xf32, #tpu.memory_space<vmem>>, vector<8x256xf32>
      %cst = arith.constant dense<0.000000e+00> : vector<256xf32>
      %12 = vector.multi_reduction <add>, %11, %cst [0] : vector<8x256xf32> to vector<256xf32>
      %13 = vector.shape_cast %12 : vector<256xf32> to vector<1x256xf32>
      %cst_11 = arith.constant 2.500000e-01 : f32
      %14 = vector.broadcast %cst_11 : f32 to vector<1x256xf32>
      %15 = arith.mulf %13, %14 : vector<1x256xf32>
      %c0_12 = arith.constant 0 : index
      %c0_13 = arith.constant 0 : index
      %c0_14 = arith.constant 0 : index
      %16 = vector.load %arg4[%c0_12, %c0_13, %c0_14] : memref<1x1x256xf32, #tpu.memory_space<vmem>>, vector<1x1x256xf32>
      %17 = vector.shape_cast %16 : vector<1x1x256xf32> to vector<1x256xf32>
      %18 = vector.shape_cast %15 : vector<1x256xf32> to vector<1x1x256xf32>
      tpu.vector_store %arg4[%c0_12, %c0_13, %c0_14], %18 {strides = array<i32>} : memref<1x1x256xf32, #tpu.memory_space<vmem>>, vector<1x1x256xf32>,
    } else {
    }
    return
  }
  func.func @transform_0(%arg0: i32, %arg1: i32, %arg2: i32) -> (i32, i32, i32) {
    %c0_i32 = arith.constant 0 : i32
    return %arg0, %arg2, %arg1 : i32, i32, i32
  }
  func.func @transform_1(%arg0: i32, %arg1: i32, %arg2: i32) -> (i32, i32, i32) {
    %c0_i32 = arith.constant 0 : i32
    %c0_i32_0 = arith.constant 0 : i32
    return %arg0, %c0_i32, %arg1 : i32, i32, i32
  }
}

</mosaic_0001>

<llo_original>
// kernel: tpu_custom_call.1
$region0: #{tpu_custom_call.1}
  #allocation0 [shape = 'u32[]', space=smem, size = 0x4, offset = 0x4, fixed_abs, tag = 'smem constant byte address 0x4 - core index']
  #allocation1 [shape = 'u32[144,128]{1,0:T(1,128)}', space=vmem, size = 0x12000, scoped, tag = 'internal scratch']
  #allocation2 [shape = 'f32[8,256]{1,0:T(8,128)}', space=vmem, size = 0x2000, scoped, tag = 'scratch operand']
  %s0 = inlined_call_operand.hbm [shape: f32[2,4,256], index: 0, kind: input, shape index: {}]
  %s1 = inlined_call_operand.hbm [shape: f32[2,1,256], index: 1, kind: output, shape index: {}]
  %s2 = sld [smem:[#allocation0]]
  $region49: #{tpu_custom_call.1} parent=0
    _
  %s4 = ssub.s32 1, %s2
  %s5 = scalar_select 0, %s4, %s2
  $region1: #{tpu_custom_call.1} parent=0
    #allocation3 [shape = 'u8[8192]{0}', space=vmem, size = 0x2000, scoped, tag = 'input window, operand 0']
    #allocation4 [shape = 's32[2]{0}', space=sflag, size = 0x8, scoped, tag = 'scoped memory for tpu_custom_call.1']
    #allocation5 [shape = 's32[2]{0}', space=sflag, size = 0x8, scoped, tag = 'scoped memory for tpu_custom_call.1']
    #allocation6 [shape = 'u8[2048]{0}', space=vmem, size = 0x800, scoped, tag = 'output window, operand 0']
    %6 = vsyncpa [#allocation4], 0
    %s7 = scalar_lea.sflag [#allocation4], 1
    %8 = vsyncpa %s7, 0
    %9 = vsyncpa [#allocation5], 0
    %s10 = scalar_lea.sflag [#allocation5], 1
    %11 = vsyncpa %s10, 0
    loop: start=0, step=1, limit=4
    $region2: #{tpu_custom_call.1} parent=1 // loop_pre_header
      _
    $region3: #{tpu_custom_call.1} parent=1 // loop_header
      %s13 = sphi 0, %s17
      %p14 = scmp.ge.s32.totalorder %s13, 4
      %s20 = sphi 0, %s39
      %s21 = sphi 0, %s35
      %s22 = sphi 0, %s31
      %s23 = sphi 0, %s20
      %s24 = sphi 0, %s21
      %s25 = sphi 0, %s22
      %s26 = sphi 0, %s23
      %s27 = sphi 0, %s24
      %s28 = sphi 0, %s25
      %s46 = sphi 0, %s48
      %s49 = sphi 0, %s46
      %s50 = sphi 0, %s49
      %s66 = sphi 0, %s50
      %s74 = sphi 0, %s76
      %s77 = sphi 0, %s74
      %s78 = sphi 0, %s77
      %s94 = sphi 0, %s78
    $region4: #{tpu_custom_call.1} parent=1 // loop_header_branch
      %16 = sbr.rel (%p14) target = $region8
    $region5: #{tpu_custom_call.1} parent=1 // loop_body
      %s18 = ssub.s32 %s13, 1
      %s19 = ssub.s32 %s13, 2
      %s29 = sadd.s32 1, %s22
      %p30 = scmp.ge.s32.totalorder %s29, 1
      %s31 = scalar_select %p30, 0, %s29
      %s32 = sadd.s32 1, %s21
      %s33 = scalar_select %p30, %s32, %s21
      %p34 = scmp.ge.s32.totalorder %s33, 1
      %s35 = scalar_select %p34, 0, %s33
      %s36 = sadd.s32 1, %s20
      %s37 = scalar_select %p34, %s36, %s20
      %p38 = scmp.ge.s32.totalorder %s37, 2
      %s39 = scalar_select %p38, 0, %s37
      %s40 = ssub.s32 %s20, %s39
      %s41 = ssub.s32 %s22, %s31
      %s42 = sor.u32 %s40, %s41
      %s43 = ssub.s32 %s21, %s35
      %s44 = sor.u32 %s42, %s43
      %p45 = scmp.eq.s32.totalorder %s44, 0
      %s47 = sadd.s32 %s46, 1
      %s48 = scalar_select %p45, %s46, %s47
      %p51 = pneg %p45
      %p52 = scmp.eq.s32.totalorder %s13, 1
      %p53 = por %p51, %p52
      %p54 = scmp.ne.s32.totalorder %s46, %s49
      %p55 = scmp.eq.s32.totalorder %s13, 0
      %p56 = por %p54, %p55
      %p57 = scmp.ne.s32.totalorder %s46, %s49
      %p58 = scmp.eq.s32.totalorder %s18, 1
      %p59 = por %p57, %p58
      %p60 = scmp.ne.s32.totalorder %s49, %s50
      %p61 = scmp.eq.s32.totalorder %s18, 0
      %p62 = por %p60, %p61
      %p63 = scmp.ne.s32.totalorder %s49, %s50
      %p64 = scmp.eq.s32.totalorder %s19, 1
      %p65 = por %p63, %p64
      %p67 = scmp.ne.s32.totalorder %s50, %s66
      %p68 = scmp.eq.s32.totalorder %s19, 0
      %p69 = por %p67, %p68
      %s70 = ssub.s32 %s20, %s39
      %s71 = ssub.s32 %s21, %s35
      %s72 = sor.u32 %s70, %s71
      %p73 = scmp.eq.s32.totalorder %s72, 0
      %s75 = sadd.s32 %s74, 1
      %s76 = scalar_select %p73, %s74, %s75
      %p79 = pneg %p73
      %p80 = scmp.eq.s32.totalorder %s13, 1
      %p81 = por %p79, %p80
      %p82 = scmp.ne.s32.totalorder %s74, %s77
      %p83 = scmp.eq.s32.totalorder %s13, 0
      %p84 = por %p82, %p83
      %p85 = scmp.ne.s32.totalorder %s74, %s77
      %p86 = scmp.eq.s32.totalorder %s18, 1
      %p87 = por %p85, %p86
      %p88 = scmp.ne.s32.totalorder %s77, %s78
      %p89 = scmp.eq.s32.totalorder %s18, 0
      %p90 = por %p88, %p89
      %p91 = scmp.ne.s32.totalorder %s77, %s78
      %p92 = scmp.eq.s32.totalorder %s19, 1
      %p93 = por %p91, %p92
      %p95 = scmp.ne.s32.totalorder %s78, %s94
      %p96 = scmp.eq.s32.totalorder %s19, 0
      %p97 = por %p95, %p96
      %p98 = scmp.le.s32.totalorder 1, %s13
      %p99 = scmp.lt.s32.totalorder %s13, 3
      %p100 = pnand %p98, %p99
      %p101 = pneg %p100
      // Predicated region
      $region9: #{tpu_custom_call.1} parent=5 // pred_check
        _
      $region10: #{tpu_custom_call.1} parent=5 // pred_check_branch
        %103 = sbr.rel (%p100) target = $region12
      $region11: #{tpu_custom_call.1} parent=5 // pred_region
        %s104 = ssub.s32 %s13, 1
      $region12: #{tpu_custom_call.1} parent=5 // pred_fallthru
        _
      %p105 = scmp.lt.s32.totalorder %s13, 2
      // Predicated region
      $region13: #{tpu_custom_call.1} parent=5 // pred_check
        %p106 = pneg %p105
      $region14: #{tpu_custom_call.1} parent=5 // pred_check_branch
        %108 = sbr.rel (%p106) target = $region16
      $region15: #{tpu_custom_call.1} parent=5 // pred_region
        // Predicated region
        $region17: #{tpu_custom_call.1} parent=15 // pred_check
          %p109 = pneg %p56
        $region18: #{tpu_custom_call.1} parent=15 // pred_check_branch
          %111 = sbr.rel (%p109) target = $region20
        $region19: #{tpu_custom_call.1} parent=15 // pred_region
          %s112 = sand.u32 %s46, 1
          %s113 = scalar_lea.sflag [#allocation4], %s112
          %s114 = sand.u32 %s46, 1
          %s115 = smul.addr %s114, 8
          %s116 = scalar_lea.vmem [#allocation3], %s115
          %s117 = smul.u32 2, %s21
          %s119 = ssub.s32 128, 128
          %120 = vsyncadd %s113, %s119
          %s121 = smul.addr %s22, 2
          %s122 = sadd.s32 %s117, %s121
          %s123 = smul.addr %s20, 2
          %s124 = sadd.s32 %s122, %s123
          %s125 = smul.addr %s124, 64
          %s126 = scalar_lea.hbm %s0, %s125
          %s128 = sshll.u32 %s116, 4
          %s129 = int_to_ptr.vmem [resolvable:$true] %s128
          %131 = dma.hbm_to_vmem [thread:$0]  %s126, 128, %s129, %s113
        $region20: #{tpu_custom_call.1} parent=15 // pred_fallthru
          _
      $region16: #{tpu_custom_call.1} parent=5 // pred_fallthru
        _
      %p132 = scmp.le.s32.totalorder 1, %s13
      %p133 = scmp.lt.s32.totalorder %s13, 3
      %p134 = pnand %p132, %p133
      %p135 = pneg %p134
      // Predicated region
      $region21: #{tpu_custom_call.1} parent=5 // pred_check
        _
      $region22: #{tpu_custom_call.1} parent=5 // pred_check_branch
        %137 = sbr.rel (%p134) target = $region24
      $region23: #{tpu_custom_call.1} parent=5 // pred_region
        %s138 = ssub.s32 %s13, 1
        %s139 = sand.u32 %s49, 1
        %s140 = scalar_lea.sflag [#allocation4], %s139
        %s141 = sand.u32 %s49, 1
        %s142 = smul.addr %s141, 8
        %s143 = scalar_lea.vmem [#allocation3], %s142
        // Predicated region
        $region25: #{tpu_custom_call.1} parent=23 // pred_check
          %p144 = pneg %p62
        $region26: #{tpu_custom_call.1} parent=23 // pred_check_branch
          %146 = sbr.rel (%p144) target = $region28
        $region27: #{tpu_custom_call.1} parent=23 // pred_region
          %147 = dma.done %s140, 128
        $region28: #{tpu_custom_call.1} parent=23 // pred_fallthru
          _
        %s148 = sand.u32 %s49, 1
        %s149 = scalar_lea.sflag [#allocation4], %s148
        %s150 = sand.u32 %s49, 1
        %s151 = smul.addr %s150, 8
        %s152 = scalar_lea.vmem [#allocation3], %s151
        %p153 = pneg %p62
        %p154 = pneg %p59
        %p155 = pneg %p90
        %p156 = pneg %p87
        %s157 = sand.u32 %s77, 1
        %s158 = scalar_lea.sflag [#allocation5], %s157
        %s159 = sand.u32 %s77, 1
        %s160 = smul.addr %s159, 2
        %s161 = scalar_lea.vmem [#allocation6], %s160
        %s162 = smul.u32 2, %s24
        %s163 = smul.u32 2, %s24
        %p164 = scmp.eq.s32.totalorder %s25, 0
        // Predicated region
        $region29: #{tpu_custom_call.1} parent=23 // pred_check
          %p165 = pneg %p164
        $region30: #{tpu_custom_call.1} parent=23 // pred_check_branch
          %167 = sbr.rel (%p165) target = $region32
        $region31: #{tpu_custom_call.1} parent=23 // pred_region
          %168 = vst [vmem:[#allocation2] sm:$0xff] 0.0
          %169 = vst [vmem:[#allocation2 + $0x8] sm:$0xff] 0.0
        $region32: #{tpu_custom_call.1} parent=23 // pred_fallthru
          _
        %v170 = vld [vmem:[#allocation2] sm:$0xf]
        %v171 = vld [vmem:[#allocation2 + $0x8] sm:$0xf]
        %v172 = vld [vmem:[%s143] sm:$0xff]
        %v174 = vcombine.high %v172, %v172
        %v176 = vadd.f32 %v170, %v172
        %v177 = vadd.f32 %v171, %v174
        %178 = vst [vmem:[#allocation2] sm:$0xf] %v176
        %179 = vst [vmem:[#allocation2 + $0x8] sm:$0xf] %v177
        // Predicated region
        $region33: #{tpu_custom_call.1} parent=23 // pred_check
          %p180 = pneg %p164
        $region34: #{tpu_custom_call.1} parent=23 // pred_check_branch
          %182 = sbr.rel (%p180) target = $region36
        $region35: #{tpu_custom_call.1} parent=23 // pred_region
          %v183 = vld [vmem:[#allocation2] sm:$0xff]
          %v184 = vld [vmem:[#allocation2 + $0x8] sm:$0xff]
          %v185 = vrot.slane %v183, 4
          %v186 = vadd.f32 %v183, %v185
          %v187 = vrot.slane %v186, 2
          %v188 = vadd.f32 %v186, %v187
          %v189 = vrot.slane %v188, 1
          %v190 = vadd.f32 %v188, %v189
          %v191 = vrot.slane %v184, 4
          %v192 = vadd.f32 %v184, %v191
          %v193 = vrot.slane %v192, 2
          %v194 = vadd.f32 %v192, %v193
          %v195 = vrot.slane %v194, 1
          %v196 = vadd.f32 %v194, %v195
          %v197 = vmul.f32 %v190, 0.25
          %v198 = vmul.f32 %v196, 0.25
          %v201 = vcombine.low %v197, %v198
          %v203 = vunpack.c.l.s4 1966171168
          %v204 = vunpack.c.0.s8 %v203
          %v205 = vlaneseq
          %v206 = vshrl.u32 %v205, 7
          %v207 = vsub.s32 %v204, %v206
          %v208 = vrot.slane %v201, %v207
          %v210 = vunpack.c.l.s4 1966171168
          %v211 = vunpack.c.0.s8 %v210
          %v212 = vlaneseq
          %v213 = vshrl.u32 %v212, 7
          %v214 = vsub.s32 %v211, %v213
          %v215 = vrot.slane %v208, %v214
          %v217 = vlaneseq
          %vm218 = vcmp.ge.s32.totalorder %v217, 0
          %vm219 = vcmp.lt.s32.totalorder %v217, 256
          %vm220 = vmand %vm218, %vm219
          %221 = vst.msk [vmem:[%s161] sm:$0x3] %vm220, %v215
        $region36: #{tpu_custom_call.1} parent=23 // pred_fallthru
          _
        %s222 = sand.u32 %s77, 1
        %s223 = scalar_lea.sflag [#allocation5], %s222
        %s224 = sand.u32 %s77, 1
        %s225 = smul.addr %s224, 2
        %s226 = scalar_lea.vmem [#allocation6], %s225
        // Predicated region
        $region37: #{tpu_custom_call.1} parent=23 // pred_check
          %p227 = pneg %p87
        $region38: #{tpu_custom_call.1} parent=23 // pred_check_branch
          %229 = sbr.rel (%p227) target = $region40
        $region39: #{tpu_custom_call.1} parent=23 // pred_region
          %s230 = smul.u32 2, %s24
          %s232 = ssub.s32 32, 32
          %233 = vsyncadd %s223, %s232
          %s234 = smul.addr %s23, 2
          %s235 = sadd.s32 %s230, %s234
          %s236 = smul.addr %s235, 16
          %s237 = scalar_lea.hbm %s1, %s236
          %s239 = sshll.u32 %s226, 4
          %s240 = int_to_ptr.vmem [resolvable:$true] %s239
          %242 = dma.vmem_to_hbm [thread:$0]  %s240, 32, %s237, %s223
        $region40: #{tpu_custom_call.1} parent=23 // pred_fallthru
          _
      $region24: #{tpu_custom_call.1} parent=5 // pred_fallthru
        _
      %p243 = scmp.le.s32.totalorder 2, %s13
      // Predicated region
      $region41: #{tpu_custom_call.1} parent=5 // pred_check
        %p244 = pneg %p243
      $region42: #{tpu_custom_call.1} parent=5 // pred_check_branch
        %246 = sbr.rel (%p244) target = $region44
      $region43: #{tpu_custom_call.1} parent=5 // pred_region
        %s247 = ssub.s32 %s13, 2
        // Predicated region
        $region45: #{tpu_custom_call.1} parent=43 // pred_check
          %p248 = pneg %p93
        $region46: #{tpu_custom_call.1} parent=43 // pred_check_branch
          %250 = sbr.rel (%p248) target = $region48
        $region47: #{tpu_custom_call.1} parent=43 // pred_region
          %s251 = sand.u32 %s78, 1
          %s252 = scalar_lea.sflag [#allocation5], %s251
          %s253 = sand.u32 %s78, 1
          %s254 = smul.addr %s253, 2
          %s255 = scalar_lea.vmem [#allocation6], %s254
          %256 = dma.done %s252, 32
        $region48: #{tpu_custom_call.1} parent=43 // pred_fallthru
          _
      $region44: #{tpu_custom_call.1} parent=5 // pred_fallthru
        _
    $region6: #{tpu_custom_call.1} parent=1 // loop_footer
      %s17 = sadd.s32 1, %s13
    $region7: #{tpu_custom_call.1} parent=1 // loop_footer_branch
      %12 = sbr.rel target = $region3
    $region8: #{tpu_custom_call.1} parent=1 // loop_exit
      _
    %257 = vsyncpa [#allocation4], 1
    %s258 = scalar_lea.sflag [#allocation4], 1
    %259 = vsyncpa %s258, 1
    %260 = vsyncpa [#allocation5], 1
    %s261 = scalar_lea.sflag [#allocation5], 1
    %262 = vsyncpa %s261, 1

</llo_original>
